<compile_context>
chip_gen: v7x
topology: tpu7x:2x2x1
jax: 0.10.0
libtpu: 0.0.40
codegen_flags: <defaults>
</compile_context>

<pallas_src>
import functools

import jax
import jax.numpy as jnp
from jax.experimental import pallas as pl
from jax.experimental.pallas import tpu as pltpu

EPS = 1e-5


def _linear1(x, w1):
    """x @ w1 with f32 accumulation.

    For very small inner dims (moon dataset: F_in = 4) the MXU pipeline
    fill/drain latency exceeds the arithmetic, so unroll into broadcast
    multiply-adds on the VPU instead of issuing a vmatmul.
    """
    f_in = x.shape[1]
    if f_in <= 8:
        acc = x[:, 0:1] * w1[0:1, :]
        for k in range(1, f_in):
            acc = acc + x[:, k:k + 1] * w1[k:k + 1, :]
        return acc
    return jnp.dot(x, w1, preferred_element_type=jnp.float32)


def moon_v2_kernel(inv_batch,  # python float, bound via functools.partial
                   x_ref, w1_ref, b1_ref, gamma_ref, beta_ref, w2_ref, b2_ref,
                   o_ref,
                   sum_ref, sumsq_ref, stats_ref):
    p = pl.program_id(0)           # 0: stats pass, 1: normalize + output pass
    t = pl.program_id(1)           # batch tile
    n_tiles = pl.num_programs(1)

    # Linear 1 (+ bias).  Recomputed in both passes: cheaper than staging the
    # whole (B, H) hidden activation in VMEM when the batch is large.
    h = _linear1(x_ref[...], w1_ref[...]) + b1_ref[...]

    # ---- Pass 0: accumulate full-batch BatchNorm statistics ---------------
    @pl.when(p == 0)
    def _stats_pass():
        @pl.when(t == 0)
        def _init():
            sum_ref[...] = jnp.zeros_like(sum_ref)
            sumsq_ref[...] = jnp.zeros_like(sumsq_ref)

        sum_ref[...] += jnp.sum(h, axis=0, keepdims=True)
        sumsq_ref[...] += jnp.sum(h * h, axis=0, keepdims=True)

        # Fold the BN affine into one scale/shift, computed once per batch.
        @pl.when(t == n_tiles - 1)
        def _finalize():
            mean = sum_ref[...] * inv_batch
            var = jnp.maximum(sumsq_ref[...] * inv_batch - mean * mean, 0.0)
            scale = gamma_ref[...] * jax.lax.rsqrt(var + EPS)   # EUP rsqrt
            shift = beta_ref[...] - mean * scale
            stats_ref[0:1, :] = scale
            stats_ref[1:2, :] = shift

    # ---- Pass 1: normalize, Tanh, Linear 2 ---------------------------------
    @pl.when(p == 1)
    def _output_pass():
        scale = stats_ref[0:1, :]
        shift = stats_ref[1:2, :]
        a = jnp.tanh(h * scale + shift)                         # EUP tanh
        out = jnp.dot(a, w2_ref[...], preferred_element_type=jnp.float32)
        # NOTE: for huge B with tiny F_out, a lane-dense (padded/transposed)
        # output layout would avoid masked stores; irrelevant at these shapes.
        o_ref[...] = (out + b2_ref[...]).astype(o_ref.dtype)


def moon_model_v2(x, w1, b1, gamma, beta, w2, b2, *, block_b=None):
    """Forward pass of MoonModelV2 (training-mode BatchNorm1d)."""
    B, f_in = x.shape
    hidden = w1.shape[1]
    f_out = w2.shape[1]

    if block_b is None:
        # Whole batch in one tile when small; otherwise a 1024-row tile keeps
        # the f32 activation blocks small enough to double-buffer well inside
        # v7x's 64 MiB physical VMEM (and v5e/v6e's 128 MiB).
        block_b = B if B <= 1024 else 1024
    assert B % block_b == 0, "batch must divide evenly into block_b tiles"
    assert block_b == B or block_b % 8 == 0, "block_b must be a multiple of 8"
    num_tiles = B // block_b

    vmem = pltpu.MemorySpace.VMEM

    def full_block(a):
        return pl.BlockSpec(a.shape, lambda p, t: (0, 0), memory_space=vmem)

    grid_spec = pltpu.PrefetchScalarGridSpec(
        num_scalar_prefetch=0,
        grid=(2, num_tiles),
        in_specs=[
            pl.BlockSpec((block_b, f_in), lambda p, t: (t, 0),
                         memory_space=vmem),
            full_block(w1), full_block(b1), full_block(gamma),
            full_block(beta), full_block(w2), full_block(b2),
        ],
        out_specs=pl.BlockSpec((block_b, f_out), lambda p, t: (t, 0),
                               memory_space=vmem),
        scratch_shapes=[
            pltpu.VMEM((1, hidden), jnp.float32),   # per-feature sum
            pltpu.VMEM((1, hidden), jnp.float32),   # per-feature sum of sq
            pltpu.VMEM((2, hidden), jnp.float32),   # folded [scale; shift]
        ],
    )

    return pl.pallas_call(
        functools.partial(moon_v2_kernel, 1.0 / float(B)),
        out_shape=jax.ShapeDtypeStruct((B, f_out), jnp.float32),
        grid_spec=grid_spec,
        compiler_params=pltpu.CompilerParams(
            # Both axes couple through the stats scratch / output revisits.
            dimension_semantics=("arbitrary", "arbitrary")),
    )(x, w1, b1, gamma, beta, w2, b2)


def reference(x, w1, b1, gamma, beta, w2, b2):
    h = x @ w1 + b1
    mean = jnp.mean(h, axis=0, keepdims=True)
    var = jnp.mean((h - mean) ** 2, axis=0, keepdims=True)  # biased, like BN
    hn = (h - mean) / jnp.sqrt(var + EPS) * gamma + beta
    return jnp.tanh(hn) @ w2 + b2


def _make_params(key, f_in, hidden, f_out):
    kw1, kb1, kw2, kb2 = jax.random.split(key, 4)
    lim1 = 1.0 / (f_in ** 0.5)
    w1 = jax.random.uniform(kw1, (f_in, hidden), jnp.float32, -lim1, lim1)
    b1 = jax.random.uniform(kb1, (1, hidden), jnp.float32, -lim1, lim1)
    gamma = jnp.ones((1, hidden), jnp.float32)    # BatchNorm1d weight init
    beta = jnp.zeros((1, hidden), jnp.float32)    # BatchNorm1d bias init
    lim2 = 1.0 / (hidden ** 0.5)
    w2 = jax.random.uniform(kw2, (hidden, f_out), jnp.float32, -lim2, lim2)
    b2 = jax.random.uniform(kb2, (1, f_out), jnp.float32, -lim2, lim2)
    return w1, b1, gamma, beta, w2, b2


if __name__ == "__main__":
    # Small, moon-dataset-like shapes.
    B, F_IN, HIDDEN, F_OUT = 8, 4, 32, 4

    key = jax.random.PRNGKey(0)
    kx, kparams, kx2 = jax.random.split(key, 3)

    x = jax.random.normal(kx, (B, F_IN), dtype=jnp.float32)
    w1, b1, gamma, beta, w2, b2 = _make_params(kparams, F_IN, HIDDEN, F_OUT)

    out = moon_model_v2(x, w1, b1, gamma, beta, w2, b2)
    out = jax.block_until_ready(out)

    ref = reference(x, w1, b1, gamma, beta, w2, b2)
    assert out.shape == (B, F_OUT)
    assert jnp.allclose(out, ref, atol=2e-5, rtol=2e-5), "mismatch vs reference"

    # Also exercise the multi-tile batch grid (4 tiles of 16 rows) to verify
    # the two-pass, full-batch BatchNorm statistics stay exact under tiling.
    B2 = 64
    x2 = jax.random.normal(kx2, (B2, F_IN), dtype=jnp.float32)
    out2 = moon_model_v2(x2, w1, b1, gamma, beta, w2, b2, block_b=16)
    out2 = jax.block_until_ready(out2)
    ref2 = reference(x2, w1, b1, gamma, beta, w2, b2)
    assert out2.shape == (B2, F_OUT)
    assert jnp.allclose(out2, ref2, atol=2e-5, rtol=2e-5), "tiled mismatch"

    print("KERNEL_OK")
</pallas_src>

<mosaic_0001>
module attributes {stable_mosaic.version = 11 : i64} {
  func.func @moon_v2_kernel(%arg0: i32, %arg1: i32, %arg2: memref<8x4xf32, #tpu.memory_space<vmem>>, %arg3: memref<4x32xf32, #tpu.memory_space<vmem>>, %arg4: memref<1x32xf32, #tpu.memory_space<vmem>>, %arg5: memref<1x32xf32, #tpu.memory_space<vmem>>, %arg6: memref<1x32xf32, #tpu.memory_space<vmem>>, %arg7: memref<32x4xf32, #tpu.memory_space<vmem>>, %arg8: memref<1x4xf32, #tpu.memory_space<vmem>>, %arg9: memref<8x4xf32, #tpu.memory_space<vmem>>, %arg10: memref<1x32xf32, #tpu.memory_space<vmem>>, %arg11: memref<1x32xf32, #tpu.memory_space<vmem>>, %arg12: memref<2x32xf32, #tpu.memory_space<vmem>>) attributes {dimension_semantics = [#tpu.dimension_semantics<arbitrary>, #tpu.dimension_semantics<arbitrary>], iteration_bounds = array<i64: 2, 1>, scalar_prefetch = 0 : i64, scratch_operands = 3 : i64, tpu.core_type = #tpu.core_type<tc>, window_params = [{transform_indices = @transform_0, window_bounds = array<i64: 8, 4>}, {pipeline_mode = #tpu.pipeline_mode<synchronous>, transform_indices = @transform_1, window_bounds = array<i64: 4, 32>}, {pipeline_mode = #tpu.pipeline_mode<synchronous>, transform_indices = @transform_2, window_bounds = array<i64: 1, 32>}, {pipeline_mode = #tpu.pipeline_mode<synchronous>, transform_indices = @transform_3, window_bounds = array<i64: 1, 32>}, {pipeline_mode = #tpu.pipeline_mode<synchronous>, transform_indices = @transform_4, window_bounds = array<i64: 1, 32>}, {pipeline_mode = #tpu.pipeline_mode<synchronous>, transform_indices = @transform_5, window_bounds = array<i64: 32, 4>}, {pipeline_mode = #tpu.pipeline_mode<synchronous>, transform_indices = @transform_6, window_bounds = array<i64: 1, 4>}, {transform_indices = @transform_7, window_bounds = array<i64: 8, 4>}]} {
    %c0 = arith.constant 0 : index
    %c0_0 = arith.constant 0 : index
    %0 = vector.load %arg2[%c0, %c0_0] : memref<8x4xf32, #tpu.memory_space<vmem>>, vector<8x4xf32>
    %c0_1 = arith.constant 0 : index
    %c0_2 = arith.constant 0 : index
    %1 = vector.load %arg3[%c0_1, %c0_2] : memref<4x32xf32, #tpu.memory_space<vmem>>, vector<4x32xf32>
    %2 = vector.extract_strided_slice %0 {offsets = [0, 0], sizes = [8, 1], strides = [1, 1]} : vector<8x4xf32> to vector<8x1xf32>
    %3 = vector.extract_strided_slice %1 {offsets = [0, 0], sizes = [1, 32], strides = [1, 1]} : vector<4x32xf32> to vector<1x32xf32>
    %4 = vector.broadcast %2 : vector<8x1xf32> to vector<8x32xf32>
    %5 = vector.broadcast %3 : vector<1x32xf32> to vector<8x32xf32>
    %6 = arith.mulf %4, %5 : vector<8x32xf32>
    %7 = vector.extract_strided_slice %0 {offsets = [0, 1], sizes = [8, 1], strides = [1, 1]} : vector<8x4xf32> to vector<8x1xf32>
    %8 = vector.extract_strided_slice %1 {offsets = [1, 0], sizes = [1, 32], strides = [1, 1]} : vector<4x32xf32> to vector<1x32xf32>
    %9 = vector.broadcast %7 : vector<8x1xf32> to vector<8x32xf32>
    %10 = vector.broadcast %8 : vector<1x32xf32> to vector<8x32xf32>
    %11 = arith.mulf %9, %10 : vector<8x32xf32>
    %12 = arith.addf %6, %11 : vector<8x32xf32>
    %13 = vector.extract_strided_slice %0 {offsets = [0, 2], sizes = [8, 1], strides = [1, 1]} : vector<8x4xf32> to vector<8x1xf32>
    %14 = vector.extract_strided_slice %1 {offsets = [2, 0], sizes = [1, 32], strides = [1, 1]} : vector<4x32xf32> to vector<1x32xf32>
    %15 = vector.broadcast %13 : vector<8x1xf32> to vector<8x32xf32>
    %16 = vector.broadcast %14 : vector<1x32xf32> to vector<8x32xf32>
    %17 = arith.mulf %15, %16 : vector<8x32xf32>
    %18 = arith.addf %12, %17 : vector<8x32xf32>
    %19 = vector.extract_strided_slice %0 {offsets = [0, 3], sizes = [8, 1], strides = [1, 1]} : vector<8x4xf32> to vector<8x1xf32>
    %20 = vector.extract_strided_slice %1 {offsets = [3, 0], sizes = [1, 32], strides = [1, 1]} : vector<4x32xf32> to vector<1x32xf32>
    %21 = vector.broadcast %19 : vector<8x1xf32> to vector<8x32xf32>
    %22 = vector.broadcast %20 : vector<1x32xf32> to vector<8x32xf32>
    %23 = arith.mulf %21, %22 : vector<8x32xf32>
    %24 = arith.addf %18, %23 : vector<8x32xf32>
    %c0_3 = arith.constant 0 : index
    %c0_4 = arith.constant 0 : index
    %25 = vector.load %arg4[%c0_3, %c0_4] : memref<1x32xf32, #tpu.memory_space<vmem>>, vector<1x32xf32>
    %26 = vector.broadcast %25 : vector<1x32xf32> to vector<8x32xf32>
    %27 = arith.addf %24, %26 : vector<8x32xf32>
    %c0_i32 = arith.constant 0 : i32
    %28 = arith.cmpi eq, %arg0, %c0_i32 : i32
    %29 = arith.extui %28 : i1 to i32
    %c0_i32_5 = arith.constant 0 : i32
    %30 = arith.cmpi ne, %29, %c0_i32_5 : i32
    scf.if %30 {
      %c0_i32_7 = arith.constant 0 : i32
      %34 = arith.cmpi eq, %arg1, %c0_i32_7 : i32
      %35 = arith.extui %34 : i1 to i32
      %c0_i32_8 = arith.constant 0 : i32
      %36 = arith.cmpi ne, %35, %c0_i32_8 : i32
      scf.if %36 {
        %cst_20 = arith.constant 0.000000e+00 : f32
        %51 = vector.broadcast %cst_20 : f32 to vector<1x32xf32>
        %c0_21 = arith.constant 0 : index
        %c0_22 = arith.constant 0 : index
        %52 = vector.load %arg10[%c0_21, %c0_22] : memref<1x32xf32, #tpu.memory_space<vmem>>, vector<1x32xf32>
        tpu.vector_store %arg10[%c0_21, %c0_22], %51 {strides = array<i32>} : memref<1x32xf32, #tpu.memory_space<vmem>>, vector<1x32xf32>,
        %cst_23 = arith.constant 0.000000e+00 : f32
        %53 = vector.broadcast %cst_23 : f32 to vector<1x32xf32>
        %c0_24 = arith.constant 0 : index
        %c0_25 = arith.constant 0 : index
        %54 = vector.load %arg11[%c0_24, %c0_25] : memref<1x32xf32, #tpu.memory_space<vmem>>, vector<1x32xf32>
        tpu.vector_store %arg11[%c0_24, %c0_25], %53 {strides = array<i32>} : memref<1x32xf32, #tpu.memory_space<vmem>>, vector<1x32xf32>,
      } else {
      }
      %c0_9 = arith.constant 0 : index
      %c0_10 = arith.constant 0 : index
      %37 = vector.load %arg10[%c0_9, %c0_10] : memref<1x32xf32, #tpu.memory_space<vmem>>, vector<1x32xf32>
      %cst = arith.constant dense<0.000000e+00> : vector<32xf32>
      %38 = vector.multi_reduction <add>, %27, %cst [0] : vector<8x32xf32> to vector<32xf32>
      %39 = vector.shape_cast %38 : vector<32xf32> to vector<1x32xf32>
      %40 = arith.addf %37, %39 : vector<1x32xf32>
      %c0_11 = arith.constant 0 : index
      %c0_12 = arith.constant 0 : index
      %41 = vector.load %arg10[%c0_11, %c0_12] : memref<1x32xf32, #tpu.memory_space<vmem>>, vector<1x32xf32>
      tpu.vector_store %arg10[%c0_11, %c0_12], %40 {strides = array<i32>} : memref<1x32xf32, #tpu.memory_space<vmem>>, vector<1x32xf32>,
      %c0_13 = arith.constant 0 : index
      %c0_14 = arith.constant 0 : index
      %42 = vector.load %arg11[%c0_13, %c0_14] : memref<1x32xf32, #tpu.memory_space<vmem>>, vector<1x32xf32>
      %43 = arith.mulf %27, %27 : vector<8x32xf32>
      %cst_15 = arith.constant dense<0.000000e+00> : vector<32xf32>
      %44 = vector.multi_reduction <add>, %43, %cst_15 [0] : vector<8x32xf32> to vector<32xf32>
      %45 = vector.shape_cast %44 : vector<32xf32> to vector<1x32xf32>
      %46 = arith.addf %42, %45 : vector<1x32xf32>
      %c0_16 = arith.constant 0 : index
      %c0_17 = arith.constant 0 : index
      %47 = vector.load %arg11[%c0_16, %c0_17] : memref<1x32xf32, #tpu.memory_space<vmem>>, vector<1x32xf32>
      tpu.vector_store %arg11[%c0_16, %c0_17], %46 {strides = array<i32>} : memref<1x32xf32, #tpu.memory_space<vmem>>, vector<1x32xf32>,
      %c0_i32_18 = arith.constant 0 : i32
      %48 = arith.cmpi eq, %arg1, %c0_i32_18 : i32
      %49 = arith.extui %48 : i1 to i32
      %c0_i32_19 = arith.constant 0 : i32
      %50 = arith.cmpi ne, %49, %c0_i32_19 : i32
      scf.if %50 {
        %c0_20 = arith.constant 0 : index
        %c0_21 = arith.constant 0 : index
        %51 = vector.load %arg10[%c0_20, %c0_21] : memref<1x32xf32, #tpu.memory_space<vmem>>, vector<1x32xf32>
        %cst_22 = arith.constant 1.250000e-01 : f32
        %52 = vector.broadcast %cst_22 : f32 to vector<1x32xf32>
        %53 = arith.mulf %51, %52 : vector<1x32xf32>
        %c0_23 = arith.constant 0 : index
        %c0_24 = arith.constant 0 : index
        %54 = vector.load %arg11[%c0_23, %c0_24] : memref<1x32xf32, #tpu.memory_space<vmem>>, vector<1x32xf32>
        %cst_25 = arith.constant 1.250000e-01 : f32
        %55 = vector.broadcast %cst_25 : f32 to vector<1x32xf32>
        %56 = arith.mulf %54, %55 : vector<1x32xf32>
        %57 = arith.mulf %53, %53 : vector<1x32xf32>
        %58 = arith.subf %56, %57 : vector<1x32xf32>
        %cst_26 = arith.constant 0.000000e+00 : f32
        %59 = vector.broadcast %cst_26 : f32 to vector<1x32xf32>
        %60 = arith.maximumf %58, %59 : vector<1x32xf32>
        %c0_27 = arith.constant 0 : index
        %c0_28 = arith.constant 0 : index
        %61 = vector.load %arg5[%c0_27, %c0_28] : memref<1x32xf32, #tpu.memory_space<vmem>>, vector<1x32xf32>
        %cst_29 = arith.constant 9.99999974E-6 : f32
        %62 = vector.broadcast %cst_29 : f32 to vector<1x32xf32>
        %63 = arith.addf %60, %62 : vector<1x32xf32>
        %64 = math.rsqrt %63 : vector<1x32xf32>
        %65 = arith.mulf %61, %64 : vector<1x32xf32>
        %c0_30 = arith.constant 0 : index
        %c0_31 = arith.constant 0 : index
        %66 = vector.load %arg6[%c0_30, %c0_31] : memref<1x32xf32, #tpu.memory_space<vmem>>, vector<1x32xf32>
        %67 = arith.mulf %53, %65 : vector<1x32xf32>
        %68 = arith.subf %66, %67 : vector<1x32xf32>
        %c0_32 = arith.constant 0 : index
        %c0_33 = arith.constant 0 : index
        %69 = vector.load %arg12[%c0_32, %c0_33] : memref<2x32xf32, #tpu.memory_space<vmem>>, vector<1x32xf32>
        tpu.vector_store %arg12[%c0_32, %c0_33], %65 {strides = array<i32>} : memref<2x32xf32, #tpu.memory_space<vmem>>, vector<1x32xf32>,
        %c1 = arith.constant 1 : index
        %c0_34 = arith.constant 0 : index
        %70 = vector.load %arg12[%c1, %c0_34] : memref<2x32xf32, #tpu.memory_space<vmem>>, vector<1x32xf32>
        tpu.vector_store %arg12[%c1, %c0_34], %68 {strides = array<i32>} : memref<2x32xf32, #tpu.memory_space<vmem>>, vector<1x32xf32>,
      } else {
      }
    } else {
    }
    %c1_i32 = arith.constant 1 : i32
    %31 = arith.cmpi eq, %arg0, %c1_i32 : i32
    %32 = arith.extui %31 : i1 to i32
    %c0_i32_6 = arith.constant 0 : i32
    %33 = arith.cmpi ne, %32, %c0_i32_6 : i32
    scf.if %33 {
      %c0_7 = arith.constant 0 : index
      %c0_8 = arith.constant 0 : index
      %34 = vector.load %arg12[%c0_7, %c0_8] : memref<2x32xf32, #tpu.memory_space<vmem>>, vector<1x32xf32>
      %c1 = arith.constant 1 : index
      %c0_9 = arith.constant 0 : index
      %35 = vector.load %arg12[%c1, %c0_9] : memref<2x32xf32, #tpu.memory_space<vmem>>, vector<1x32xf32>
      %36 = vector.broadcast %34 : vector<1x32xf32> to vector<8x32xf32>
      %37 = arith.mulf %27, %36 : vector<8x32xf32>
      %38 = vector.broadcast %35 : vector<1x32xf32> to vector<8x32xf32>
      %39 = arith.addf %37, %38 : vector<8x32xf32>
      %40 = math.tanh %39 : vector<8x32xf32>
      %c0_10 = arith.constant 0 : index
      %c0_11 = arith.constant 0 : index
      %41 = vector.load %arg7[%c0_10, %c0_11] : memref<32x4xf32, #tpu.memory_space<vmem>>, vector<32x4xf32>
      %cst = arith.constant dense<0.000000e+00> : vector<8x4xf32>
      %42 = tpu.matmul %40, %41, %cst {dimension_numbers = #tpu.dot_dimension_numbers<[1], [0], [0], [1], [0, 0, 1, 1], [], []>} : vector<8x32xf32>, vector<32x4xf32>, vector<8x4xf32> -> vector<8x4xf32>
      %c0_12 = arith.constant 0 : index
      %c0_13 = arith.constant 0 : index
      %43 = vector.load %arg8[%c0_12, %c0_13] : memref<1x4xf32, #tpu.memory_space<vmem>>, vector<1x4xf32>
      %44 = vector.broadcast %43 : vector<1x4xf32> to vector<8x4xf32>
      %45 = arith.addf %42, %44 : vector<8x4xf32>
      %c0_14 = arith.constant 0 : index
      %c0_15 = arith.constant 0 : index
      %46 = vector.load %arg9[%c0_14, %c0_15] : memref<8x4xf32, #tpu.memory_space<vmem>>, vector<8x4xf32>
      tpu.vector_store %arg9[%c0_14, %c0_15], %45 {strides = array<i32>} : memref<8x4xf32, #tpu.memory_space<vmem>>, vector<8x4xf32>,
    } else {
    }
    return
  }
  func.func @transform_0(%arg0: i32, %arg1: i32) -> (i32, i32) {
    %c0_i32 = arith.constant 0 : i32
    %c0_i32_0 = arith.constant 0 : i32
    return %arg1, %c0_i32 : i32, i32
  }
  func.func @transform_1(%arg0: i32, %arg1: i32) -> (i32, i32) {
    %c0_i32 = arith.constant 0 : i32
    %c0_i32_0 = arith.constant 0 : i32
    %c0_i32_1 = arith.constant 0 : i32
    return %c0_i32, %c0_i32_0 : i32, i32
  }
  func.func @transform_2(%arg0: i32, %arg1: i32) -> (i32, i32) {
    %c0_i32 = arith.constant 0 : i32
    %c0_i32_0 = arith.constant 0 : i32
    %c0_i32_1 = arith.constant 0 : i32
    return %c0_i32, %c0_i32_0 : i32, i32
  }
  func.func @transform_3(%arg0: i32, %arg1: i32) -> (i32, i32) {
    %c0_i32 = arith.constant 0 : i32
    %c0_i32_0 = arith.constant 0 : i32
    %c0_i32_1 = arith.constant 0 : i32
    return %c0_i32, %c0_i32_0 : i32, i32
  }
  func.func @transform_4(%arg0: i32, %arg1: i32) -> (i32, i32) {
    %c0_i32 = arith.constant 0 : i32
    %c0_i32_0 = arith.constant 0 : i32
    %c0_i32_1 = arith.constant 0 : i32
    return %c0_i32, %c0_i32_0 : i32, i32
  }
  func.func @transform_5(%arg0: i32, %arg1: i32) -> (i32, i32) {
    %c0_i32 = arith.constant 0 : i32
    %c0_i32_0 = arith.constant 0 : i32
    %c0_i32_1 = arith.constant 0 : i32
    return %c0_i32, %c0_i32_0 : i32, i32
  }
  func.func @transform_6(%arg0: i32, %arg1: i32) -> (i32, i32) {
    %c0_i32 = arith.constant 0 : i32
    %c0_i32_0 = arith.constant 0 : i32
    %c0_i32_1 = arith.constant 0 : i32
    return %c0_i32, %c0_i32_0 : i32, i32
  }
  func.func @transform_7(%arg0: i32, %arg1: i32) -> (i32, i32) {
    %c0_i32 = arith.constant 0 : i32
    %c0_i32_0 = arith.constant 0 : i32
    return %arg1, %c0_i32 : i32, i32
  }
}

</mosaic_0001>

<llo_original>
// kernel: tpu_custom_call.1
$region0: #{tpu_custom_call.1}
  #allocation0 [shape = 'u32[]', space=smem, size = 0x4, offset = 0x4, fixed_abs, tag = 'smem constant byte address 0x4 - core index']
  #allocation1 [shape = 'u32[144,128]{1,0:T(1,128)}', space=vmem, size = 0x12000, scoped, tag = 'internal scratch']
  #allocation2 [shape = 'f32[1,32]{1,0:T(1,128)}', space=vmem, size = 0x200, scoped, tag = 'scratch operand']
  #allocation3 [shape = 'f32[1,32]{1,0:T(1,128)}', space=vmem, size = 0x200, scoped, tag = 'scratch operand']
  #allocation4 [shape = 'f32[2,32]{1,0:T(2,128)}', space=vmem, size = 0x400, scoped, tag = 'scratch operand']
  %s0 = inlined_call_operand.vmem [shape: f32[8,4], index: 0, kind: input, shape index: {}]
  %s1 = inlined_call_operand.vmem [shape: f32[4,32], index: 1, kind: input, shape index: {}]
  %s2 = inlined_call_operand.vmem [shape: f32[1,32], index: 2, kind: input, shape index: {}]
  %s3 = inlined_call_operand.vmem [shape: f32[1,32], index: 3, kind: input, shape index: {}]
  %s4 = inlined_call_operand.vmem [shape: f32[1,32], index: 4, kind: input, shape index: {}]
  %s5 = inlined_call_operand.vmem [shape: f32[32,4], index: 5, kind: input, shape index: {}]
  %s6 = inlined_call_operand.vmem [shape: f32[1,4], index: 6, kind: input, shape index: {}]
  %s7 = inlined_call_operand.vmem [shape: f32[8,4], index: 7, kind: output, shape index: {}]
  %s8 = sld [smem:[#allocation0]]
  $region77: #{tpu_custom_call.1} parent=0
    _
  %s10 = ssub.s32 1, %s8
  %s11 = scalar_select 0, %s10, %s8
  loop: start=0, step=1, limit=4
  $region2: #{tpu_custom_call.1} parent=0 // loop_pre_header
    _
  $region3: #{tpu_custom_call.1} parent=0 // loop_header
    %s13 = sphi 0, %s17
    %p14 = scmp.ge.s32.totalorder %s13, 4
    %s20 = sphi 0, %s32
    %s21 = sphi 0, %s28
    %s22 = sphi 0, %s20
    %s23 = sphi 0, %s21
    %s24 = sphi 0, %s22
    %s25 = sphi 0, %s23
    %s35 = sphi 0, %s37
    %s38 = sphi 0, %s35
    %s39 = sphi 0, %s38
    %s55 = sphi 0, %s39
    %s59 = sphi 0, %s59
    %s61 = sphi 0, %s59
    %s62 = sphi 0, %s61
    %s76 = sphi 0, %s62
    %s80 = sphi 0, %s80
    %s82 = sphi 0, %s80
    %s83 = sphi 0, %s82
    %s97 = sphi 0, %s83
    %s101 = sphi 0, %s101
    %s103 = sphi 0, %s101
    %s104 = sphi 0, %s103
    %s118 = sphi 0, %s104
    %s122 = sphi 0, %s122
    %s124 = sphi 0, %s122
    %s125 = sphi 0, %s124
    %s139 = sphi 0, %s125
    %s143 = sphi 0, %s143
    %s145 = sphi 0, %s143
    %s146 = sphi 0, %s145
    %s160 = sphi 0, %s146
    %s164 = sphi 0, %s164
    %s166 = sphi 0, %s164
    %s167 = sphi 0, %s166
    %s181 = sphi 0, %s167
    %s187 = sphi 0, %s189
    %s190 = sphi 0, %s187
    %s191 = sphi 0, %s190
    %s207 = sphi 0, %s191
  $region4: #{tpu_custom_call.1} parent=0 // loop_header_branch
    %16 = sbr.rel (%p14) target = $region8
  $region5: #{tpu_custom_call.1} parent=0 // loop_body
    %s18 = ssub.s32 %s13, 1
    %s19 = ssub.s32 %s13, 2
    %s26 = sadd.s32 1, %s21
    %p27 = scmp.ge.s32.totalorder %s26, 1
    %s28 = scalar_select %p27, 0, %s26
    %s29 = sadd.s32 1, %s20
    %s30 = scalar_select %p27, %s29, %s20
    %p31 = scmp.ge.s32.totalorder %s30, 2
    %s32 = scalar_select %p31, 0, %s30
    %s33 = ssub.s32 %s21, %s28
    %p34 = scmp.eq.s32.totalorder %s33, 0
    %s36 = sadd.s32 %s35, 1
    %s37 = scalar_select %p34, %s35, %s36
    %p40 = pneg %p34
    %p41 = scmp.eq.s32.totalorder %s13, 1
    %p42 = por %p40, %p41
    %p43 = scmp.ne.s32.totalorder %s35, %s38
    %p44 = scmp.eq.s32.totalorder %s13, 0
    %p45 = por %p43, %p44
    %p46 = scmp.ne.s32.totalorder %s35, %s38
    %p47 = scmp.eq.s32.totalorder %s18, 1
    %p48 = por %p46, %p47
    %p49 = scmp.ne.s32.totalorder %s38, %s39
    %p50 = scmp.eq.s32.totalorder %s18, 0
    %p51 = por %p49, %p50
    %p52 = scmp.ne.s32.totalorder %s38, %s39
    %p53 = scmp.eq.s32.totalorder %s19, 1
    %p54 = por %p52, %p53
    %p56 = scmp.ne.s32.totalorder %s39, %s55
    %p57 = scmp.eq.s32.totalorder %s19, 0
    %p58 = por %p56, %p57
    %s60 = sadd.s32 %s59, 1
    %p63 = scmp.eq.s32.totalorder %s13, 1
    %p64 = scmp.ne.s32.totalorder %s59, %s61
    %p65 = scmp.eq.s32.totalorder %s13, 0
    %p66 = por %p64, %p65
    %p67 = scmp.ne.s32.totalorder %s59, %s61
    %p68 = scmp.eq.s32.totalorder %s18, 1
    %p69 = por %p67, %p68
    %p70 = scmp.ne.s32.totalorder %s61, %s62
    %p71 = scmp.eq.s32.totalorder %s18, 0
    %p72 = por %p70, %p71
    %p73 = scmp.ne.s32.totalorder %s61, %s62
    %p74 = scmp.eq.s32.totalorder %s19, 1
    %p75 = por %p73, %p74
    %p77 = scmp.ne.s32.totalorder %s62, %s76
    %p78 = scmp.eq.s32.totalorder %s19, 0
    %p79 = por %p77, %p78
    %s81 = sadd.s32 %s80, 1
    %p84 = scmp.eq.s32.totalorder %s13, 1
    %p85 = scmp.ne.s32.totalorder %s80, %s82
    %p86 = scmp.eq.s32.totalorder %s13, 0
    %p87 = por %p85, %p86
    %p88 = scmp.ne.s32.totalorder %s80, %s82
    %p89 = scmp.eq.s32.totalorder %s18, 1
    %p90 = por %p88, %p89
    %p91 = scmp.ne.s32.totalorder %s82, %s83
    %p92 = scmp.eq.s32.totalorder %s18, 0
    %p93 = por %p91, %p92
    %p94 = scmp.ne.s32.totalorder %s82, %s83
    %p95 = scmp.eq.s32.totalorder %s19, 1
    %p96 = por %p94, %p95
    %p98 = scmp.ne.s32.totalorder %s83, %s97
    %p99 = scmp.eq.s32.totalorder %s19, 0
    %p100 = por %p98, %p99
    %s102 = sadd.s32 %s101, 1
    %p105 = scmp.eq.s32.totalorder %s13, 1
    %p106 = scmp.ne.s32.totalorder %s101, %s103
    %p107 = scmp.eq.s32.totalorder %s13, 0
    %p108 = por %p106, %p107
    %p109 = scmp.ne.s32.totalorder %s101, %s103
    %p110 = scmp.eq.s32.totalorder %s18, 1
    %p111 = por %p109, %p110
    %p112 = scmp.ne.s32.totalorder %s103, %s104
    %p113 = scmp.eq.s32.totalorder %s18, 0
    %p114 = por %p112, %p113
    %p115 = scmp.ne.s32.totalorder %s103, %s104
    %p116 = scmp.eq.s32.totalorder %s19, 1
    %p117 = por %p115, %p116
    %p119 = scmp.ne.s32.totalorder %s104, %s118
    %p120 = scmp.eq.s32.totalorder %s19, 0
    %p121 = por %p119, %p120
    %s123 = sadd.s32 %s122, 1
    %p126 = scmp.eq.s32.totalorder %s13, 1
    %p127 = scmp.ne.s32.totalorder %s122, %s124
    %p128 = scmp.eq.s32.totalorder %s13, 0
    %p129 = por %p127, %p128
    %p130 = scmp.ne.s32.totalorder %s122, %s124
    %p131 = scmp.eq.s32.totalorder %s18, 1
    %p132 = por %p130, %p131
    %p133 = scmp.ne.s32.totalorder %s124, %s125
    %p134 = scmp.eq.s32.totalorder %s18, 0
    %p135 = por %p133, %p134
    %p136 = scmp.ne.s32.totalorder %s124, %s125
    %p137 = scmp.eq.s32.totalorder %s19, 1
    %p138 = por %p136, %p137
    %p140 = scmp.ne.s32.totalorder %s125, %s139
    %p141 = scmp.eq.s32.totalorder %s19, 0
    %p142 = por %p140, %p141
    %s144 = sadd.s32 %s143, 1
    %p147 = scmp.eq.s32.totalorder %s13, 1
    %p148 = scmp.ne.s32.totalorder %s143, %s145
    %p149 = scmp.eq.s32.totalorder %s13, 0
    %p150 = por %p148, %p149
    %p151 = scmp.ne.s32.totalorder %s143, %s145
    %p152 = scmp.eq.s32.totalorder %s18, 1
    %p153 = por %p151, %p152
    %p154 = scmp.ne.s32.totalorder %s145, %s146
    %p155 = scmp.eq.s32.totalorder %s18, 0
    %p156 = por %p154, %p155
    %p157 = scmp.ne.s32.totalorder %s145, %s146
    %p158 = scmp.eq.s32.totalorder %s19, 1
    %p159 = por %p157, %p158
    %p161 = scmp.ne.s32.totalorder %s146, %s160
    %p162 = scmp.eq.s32.totalorder %s19, 0
    %p163 = por %p161, %p162
    %s165 = sadd.s32 %s164, 1
    %p168 = scmp.eq.s32.totalorder %s13, 1
    %p169 = scmp.ne.s32.totalorder %s164, %s166
    %p170 = scmp.eq.s32.totalorder %s13, 0
    %p171 = por %p169, %p170
    %p172 = scmp.ne.s32.totalorder %s164, %s166
    %p173 = scmp.eq.s32.totalorder %s18, 1
    %p174 = por %p172, %p173
    %p175 = scmp.ne.s32.totalorder %s166, %s167
    %p176 = scmp.eq.s32.totalorder %s18, 0
    %p177 = por %p175, %p176
    %p178 = scmp.ne.s32.totalorder %s166, %s167
    %p179 = scmp.eq.s32.totalorder %s19, 1
    %p180 = por %p178, %p179
    %p182 = scmp.ne.s32.totalorder %s167, %s181
    %p183 = scmp.eq.s32.totalorder %s19, 0
    %p184 = por %p182, %p183
    %s185 = ssub.s32 %s21, %s28
    %p186 = scmp.eq.s32.totalorder %s185, 0
    %s188 = sadd.s32 %s187, 1
    %s189 = scalar_select %p186, %s187, %s188
    %p192 = pneg %p186
    %p193 = scmp.eq.s32.totalorder %s13, 1
    %p194 = por %p192, %p193
    %p195 = scmp.ne.s32.totalorder %s187, %s190
    %p196 = scmp.eq.s32.totalorder %s13, 0
    %p197 = por %p195, %p196
    %p198 = scmp.ne.s32.totalorder %s187, %s190
    %p199 = scmp.eq.s32.totalorder %s18, 1
    %p200 = por %p198, %p199
    %p201 = scmp.ne.s32.totalorder %s190, %s191
    %p202 = scmp.eq.s32.totalorder %s18, 0
    %p203 = por %p201, %p202
    %p204 = scmp.ne.s32.totalorder %s190, %s191
    %p205 = scmp.eq.s32.totalorder %s19, 1
    %p206 = por %p204, %p205
    %p208 = scmp.ne.s32.totalorder %s191, %s207
    %p209 = scmp.eq.s32.totalorder %s19, 0
    %p210 = por %p208, %p209
    %p211 = scmp.le.s32.totalorder 1, %s13
    %p212 = scmp.lt.s32.totalorder %s13, 3
    %p213 = pnand %p211, %p212
    %p214 = pneg %p213
    // Predicated region
    $region9: #{tpu_custom_call.1} parent=5 // pred_check
      _
    $region10: #{tpu_custom_call.1} parent=5 // pred_check_branch
      %216 = sbr.rel (%p213) target = $region12
    $region11: #{tpu_custom_call.1} parent=5 // pred_region
      %s217 = ssub.s32 %s13, 1
      // Predicated region
      $region13: #{tpu_custom_call.1} parent=11 // pred_check
        %p218 = pneg %p51
      $region14: #{tpu_custom_call.1} parent=11 // pred_check_branch
        %220 = sbr.rel (%p218) target = $region16
      $region15: #{tpu_custom_call.1} parent=11 // pred_region
        %p221 = scmp.lt.s32.totalorder %s23, 0
        %s222 = scalar_select %p221, %s23, 0
        %s223 = smul.addr %s222, 8
        %s224 = scalar_lea.vmem %s0, %s223
      $region16: #{tpu_custom_call.1} parent=11 // pred_fallthru
        _
      // Predicated region
      $region17: #{tpu_custom_call.1} parent=11 // pred_check
        %p225 = pneg %p72
      $region18: #{tpu_custom_call.1} parent=11 // pred_check_branch
        %227 = sbr.rel (%p225) target = $region20
      $region19: #{tpu_custom_call.1} parent=11 // pred_region
        _
      $region20: #{tpu_custom_call.1} parent=11 // pred_fallthru
        _
      // Predicated region
      $region21: #{tpu_custom_call.1} parent=11 // pred_check
        %p228 = pneg %p93
      $region22: #{tpu_custom_call.1} parent=11 // pred_check_branch
        %230 = sbr.rel (%p228) target = $region24
      $region23: #{tpu_custom_call.1} parent=11 // pred_region
        _
      $region24: #{tpu_custom_call.1} parent=11 // pred_fallthru
        _
      // Predicated region
      $region25: #{tpu_custom_call.1} parent=11 // pred_check
        %p231 = pneg %p114
      $region26: #{tpu_custom_call.1} parent=11 // pred_check_branch
        %233 = sbr.rel (%p231) target = $region28
      $region27: #{tpu_custom_call.1} parent=11 // pred_region
        _
      $region28: #{tpu_custom_call.1} parent=11 // pred_fallthru
        _
      // Predicated region
      $region29: #{tpu_custom_call.1} parent=11 // pred_check
        %p234 = pneg %p135
      $region30: #{tpu_custom_call.1} parent=11 // pred_check_branch
        %236 = sbr.rel (%p234) target = $region32
      $region31: #{tpu_custom_call.1} parent=11 // pred_region
        _
      $region32: #{tpu_custom_call.1} parent=11 // pred_fallthru
        _
      // Predicated region
      $region33: #{tpu_custom_call.1} parent=11 // pred_check
        %p237 = pneg %p156
      $region34: #{tpu_custom_call.1} parent=11 // pred_check_branch
        %239 = sbr.rel (%p237) target = $region36
      $region35: #{tpu_custom_call.1} parent=11 // pred_region
        _
      $region36: #{tpu_custom_call.1} parent=11 // pred_fallthru
        _
      // Predicated region
      $region37: #{tpu_custom_call.1} parent=11 // pred_check
        %p240 = pneg %p177
      $region38: #{tpu_custom_call.1} parent=11 // pred_check_branch
        %242 = sbr.rel (%p240) target = $region40
      $region39: #{tpu_custom_call.1} parent=11 // pred_region
        _
      $region40: #{tpu_custom_call.1} parent=11 // pred_fallthru
        _
    $region12: #{tpu_custom_call.1} parent=5 // pred_fallthru
      _
    %p243 = scmp.lt.s32.totalorder %s13, 2
    // Predicated region
    $region41: #{tpu_custom_call.1} parent=5 // pred_check
      %p244 = pneg %p243
    $region42: #{tpu_custom_call.1} parent=5 // pred_check_branch
      %246 = sbr.rel (%p244) target = $region44
    $region43: #{tpu_custom_call.1} parent=5 // pred_region
      _
    $region44: #{tpu_custom_call.1} parent=5 // pred_fallthru
      _
    %p247 = scmp.le.s32.totalorder 1, %s13
    %p248 = scmp.lt.s32.totalorder %s13, 3
    %p249 = pnand %p247, %p248
    %p250 = pneg %p249
    // Predicated region
    $region45: #{tpu_custom_call.1} parent=5 // pred_check
      _
    $region46: #{tpu_custom_call.1} parent=5 // pred_check_branch
      %252 = sbr.rel (%p249) target = $region48
    $region47: #{tpu_custom_call.1} parent=5 // pred_region
      %s253 = ssub.s32 %s13, 1
      %p254 = scmp.lt.s32.totalorder %s23, 0
      %s255 = scalar_select %p254, %s23, 0
      %s256 = smul.addr %s255, 8
      %s257 = scalar_lea.vmem %s0, %s256
      %p258 = pneg %p51
      %p259 = pneg %p48
      %p260 = pneg %p72
      %p261 = pneg %p69
      %p262 = pneg %p93
      %p263 = pneg %p90
      %p264 = pneg %p114
      %p265 = pneg %p111
      %p266 = pneg %p135
      %p267 = pneg %p132
      %p268 = pneg %p156
      %p269 = pneg %p153
      %p270 = pneg %p177
      %p271 = pneg %p174
      %p272 = pneg %p203
      %p273 = pneg %p200
      %p274 = scmp.lt.s32.totalorder %s23, 0
      %s275 = scalar_select %p274, %s23, 0
      %s276 = smul.addr %s275, 8
      %s277 = scalar_lea.vmem %s7, %s276
      %p278 = scmp.lt.s32.totalorder %s23, 0
      %s279 = scalar_select %p278, %s23, 0
      %s280 = smul.addr %s279, 8
      %s281 = scalar_lea.vmem %s0, %s280
      %p282 = scmp.lt.s32.totalorder %s23, 0
      %s283 = scalar_select %p282, %s23, 0
      %s284 = smul.addr %s283, 8
      %s285 = scalar_lea.vmem %s7, %s284
      %v286 = vld [vmem:[%s281] sm:$0xff]
      %v287 = vld [vmem:[%s1] sm:$0xf]
      %289 = vset.pattern.permute.xlu0 0
      %290 = vperm.xlu0 %289, %v286
      %v291 = vpop.permute.xlu0 %290
      %v293 = vlaneseq
      %v294 = vshrl.u32 %v293, 7
      %v295 = vsub.s32 0, %v294
      %v296 = vrot.slane %v287, %v295
      %v297 = vmul.f32 %v291, %v296
      %298 = vset.pattern.permute.xlu0 1
      %299 = vperm.xlu0 %298, %v286
      %v300 = vpop.permute.xlu0 %299
      %v302 = vlaneseq
      %v303 = vshrl.u32 %v302, 7
      %v304 = vsub.s32 1, %v303
      %v305 = vrot.slane %v287, %v304
      %v306 = vmul.f32 %v300, %v305
      %v307 = vadd.f32 %v297, %v306
      %308 = vset.pattern.permute.xlu0 2
      %309 = vperm.xlu0 %308, %v286
      %v310 = vpop.permute.xlu0 %309
      %v312 = vlaneseq
      %v313 = vshrl.u32 %v312, 7
      %v314 = vsub.s32 2, %v313
      %v315 = vrot.slane %v287, %v314
      %v316 = vmul.f32 %v310, %v315
      %v317 = vadd.f32 %v307, %v316
      %318 = vset.pattern.permute.xlu0 3
      %319 = vperm.xlu0 %318, %v286
      %v320 = vpop.permute.xlu0 %319
      %v322 = vlaneseq
      %v323 = vshrl.u32 %v322, 7
      %v324 = vsub.s32 3, %v323
      %v325 = vrot.slane %v287, %v324
      %v326 = vmul.f32 %v320, %v325
      %v327 = vadd.f32 %v317, %v326
      %v328 = vld [vmem:[%s2] sm:$0x1]
      %v330 = vlaneseq
      %v331 = vshrl.u32 %v330, 7
      %v332 = vsub.s32 0, %v331
      %v333 = vrot.slane %v328, %v332
      %v335 = vadd.f32 %v327, %v333
      %p336 = scmp.eq.s32.totalorder %s22, 0
      // Predicated region
      $region49: #{tpu_custom_call.1} parent=47 // pred_check
        %p337 = pneg %p336
      $region50: #{tpu_custom_call.1} parent=47 // pred_check_branch
        %339 = sbr.rel (%p337) target = $region52
      $region51: #{tpu_custom_call.1} parent=47 // pred_region
        %p340 = scmp.eq.s32.totalorder %s23, 0
        // Predicated region
        $region53: #{tpu_custom_call.1} parent=51 // pred_check
          %p341 = pneg %p340
        $region54: #{tpu_custom_call.1} parent=51 // pred_check_branch
          %343 = sbr.rel (%p341) target = $region56
        $region55: #{tpu_custom_call.1} parent=51 // pred_region
          %vm344 = vcmask 253952
          %345 = vst.msk [vmem:[#allocation2] sm:$0x1] %vm344, 0.0
          %346 = vst.msk [vmem:[#allocation3] sm:$0x1] %vm344, 0.0
        $region56: #{tpu_custom_call.1} parent=51 // pred_fallthru
          _
        %v347 = vld [vmem:[#allocation2] sm:$0x1]
        %vm348 = vcmask 261120
        %v349 = vsel %vm348, %v335, 0.0
        %v350 = vrot.slane %v349, 4
        %v351 = vadd.f32 %v349, %v350
        %v352 = vrot.slane %v351, 2
        %v353 = vadd.f32 %v351, %v352
        %v354 = vrot.slane %v353, 1
        %v355 = vadd.f32 %v353, %v354
        %v356 = vadd.f32 %v347, %v355
        %vm357 = vcmask 253952
        %358 = vst.msk [vmem:[#allocation2] sm:$0x1] %vm357, %v356
        %v359 = vld [vmem:[#allocation3] sm:$0x1]
        %v360 = vmul.f32 %v335, %v335
        %v361 = vsel %vm348, %v360, 0.0
        %v362 = vrot.slane %v361, 4
        %v363 = vadd.f32 %v361, %v362
        %v364 = vrot.slane %v363, 2
        %v365 = vadd.f32 %v363, %v364
        %v366 = vrot.slane %v365, 1
        %v367 = vadd.f32 %v365, %v366
        %v368 = vadd.f32 %v359, %v367
        %369 = vst.msk [vmem:[#allocation3] sm:$0x1] %vm357, %v368
        // Predicated region
        $region57: #{tpu_custom_call.1} parent=51 // pred_check
          %p370 = pneg %p340
        $region58: #{tpu_custom_call.1} parent=51 // pred_check_branch
          %372 = sbr.rel (%p370) target = $region60
        $region59: #{tpu_custom_call.1} parent=51 // pred_region
          %v373 = vld [vmem:[#allocation2] sm:$0x1]
          %v374 = vmul.f32 %v373, 0.125
          %v375 = vld [vmem:[#allocation3] sm:$0x1]
          %v376 = vmul.f32 %v375, 0.125
          %v377 = vmul.f32 %v374, %v374
          %v378 = vsub.f32 %v376, %v377
          %v379 = vmax.f32 %v378, 0.0
          %v380 = vld [vmem:[%s3] sm:$0x1]
          %v381 = vadd.f32 %v379, 1e-05
          %v382 = vrsqrt.pop %v381
          %v383 = vmul.f32 %v380, %v382
          %v384 = vld [vmem:[%s4] sm:$0x1]
          %v385 = vmul.f32 %v374, %v383
          %v386 = vsub.f32 %v384, %v385
          %387 = vst.msk [vmem:[#allocation4] sm:$0x1] %vm357, %v383
          %388 = vst.msk [vmem:[#allocation4 + $0x1] sm:$0x1] %vm357, %v386
        $region60: #{tpu_custom_call.1} parent=51 // pred_fallthru
          _
      $region52: #{tpu_custom_call.1} parent=47 // pred_fallthru
        _
      %p389 = scmp.eq.s32.totalorder %s22, 1
      // Predicated region
      $region61: #{tpu_custom_call.1} parent=47 // pred_check
        %p390 = pneg %p389
      $region62: #{tpu_custom_call.1} parent=47 // pred_check_branch
        %392 = sbr.rel (%p390) target = $region64
      $region63: #{tpu_custom_call.1} parent=47 // pred_region
        %v393 = vld [vmem:[#allocation4] sm:$0x1]
        %v394 = vld [vmem:[#allocation4 + $0x1] sm:$0x1]
        %v395 = vlaneseq
        %v396 = vshrl.u32 %v395, 7
        %v397 = vsub.s32 0, %v396
        %v398 = vrot.slane %v393, %v397
        %v399 = vmul.f32 %v335, %v398
        %v400 = vlaneseq
        %v401 = vshrl.u32 %v400, 7
        %v402 = vsub.s32 0, %v401
        %v403 = vrot.slane %v394, %v402
        %v404 = vadd.f32 %v399, %v403
        %v405 = vtanh.pop %v404
        %v406 = vld [vmem:[%s5] sm:$0xff]
        %v407 = vld [vmem:[%s5 + $0x8] sm:$0xff]
        %v408 = vld [vmem:[%s5 + $0x10] sm:$0xff]
        %v409 = vld [vmem:[%s5 + $0x18] sm:$0xff]
        %v410 = vld [vmem:[%s6] sm:$0x1]
        %v412 = vlaneseq
        %v413 = vshrl.u32 %v412, 7
        %v414 = vsub.s32 0, %v413
        %v415 = vrot.slane %v410, %v414
        %vm417 = vcmask 261120
        %v419 = vsel %vm417, %v405, 0
        %421 = vmatprep.subr.mxu0 0.0
        %422 = vmatpush1.msra.mxu0 %v406
        %423 = vmatprep.subr.mxu0 0.0
        %424 = vmatpush1.msra.mxu0 %v407
        %425 = vmatprep.subr.mxu0 0.0
        %426 = vmatpush1.msra.mxu0 %v408
        %427 = vmatprep.subr.mxu0 0.0
        %428 = vmatpush1.msra.mxu0 %v409
        %429 = vmatprep.subr.mxu0 0.0
        %430 = vmatpush1.msra.mxu0 0.0
        %431 = vmatprep.subr.mxu0 0.0
        %432 = vmatpush1.msra.mxu0 0.0
        %433 = vmatprep.subr.mxu0 0.0
        %434 = vmatpush1.msra.mxu0 0.0
        %435 = vmatprep.subr.mxu0 0.0
        %436 = vmatpush1.msra.mxu0 0.0
        %437 = vmatprep.subr.mxu0 0.0
        %438 = vmatpush1.msra.mxu0 0.0
        %439 = vmatprep.subr.mxu0 0.0
        %440 = vmatpush1.msra.mxu0 0.0
        %441 = vmatprep.subr.mxu0 0.0
        %442 = vmatpush1.msra.mxu0 0.0
        %443 = vmatprep.subr.mxu0 0.0
        %444 = vmatpush1.msra.mxu0 0.0
        %445 = vmatprep.subr.mxu0 0.0
        %446 = vmatpush1.msra.mxu0 0.0
        %447 = vmatprep.subr.mxu0 0.0
        %448 = vmatpush1.msra.mxu0 0.0
        %449 = vmatprep.subr.mxu0 0.0
        %450 = vmatpush1.msra.mxu0 0.0
        %451 = vmatprep.subr.mxu0 0.0
        %452 = vmatpush1.msra.mxu0 0.0
        %453 = vmatprep.subr.mxu0 0.0
        %454 = vmatpush1.msra.mxu0 0.0
        %455 = vmatprep.subr.mxu0 0.0
        %456 = vmatpush1.msra.mxu0 0.0
        %457 = vmatprep.subr.mxu0 0.0
        %458 = vmatpush1.msra.mxu0 0.0
        %459 = vmatprep.subr.mxu0 0.0
        %460 = vmatpush1.msra.mxu0 0.0
        %461 = vmatprep.subr.mxu0 0.0
        %462 = vmatpush1.msra.mxu0 0.0
        %463 = vmatprep.subr.mxu0 0.0
        %464 = vmatpush1.msra.mxu0 0.0
        %465 = vmatprep.subr.mxu0 0.0
        %466 = vmatpush1.msra.mxu0 0.0
        %467 = vmatprep.subr.mxu0 0.0
        %468 = vmatpush1.msra.mxu0 0.0
        %469 = vmatprep.subr.mxu0 0.0
        %470 = vmatpush1.msra.mxu0 0.0
        %471 = vmatprep.subr.mxu0 0.0
        %472 = vmatpush1.msra.mxu0 0.0
        %473 = vmatprep.subr.mxu0 0.0
        %474 = vmatpush1.msra.mxu0 0.0
        %475 = vmatprep.subr.mxu0 0.0
        %476 = vmatpush1.msra.mxu0 0.0
        %477 = vmatprep.subr.mxu0 0.0
        %478 = vmatpush1.msra.mxu0 0.0
        %479 = vmatprep.subr.mxu0 0.0
        %480 = vmatpush1.msra.mxu0 0.0
        %481 = vmatprep.subr.mxu0 0.0
        %482 = vmatpush1.msra.mxu0 0.0
        %483 = vmatprep.subr.mxu0 0.0
        %484 = vmatpush1.msra.mxu0 0.0
        %485 = vmatprep.mubr.f32.mxu0 0.0
        %486 = vmatmul.mubr.f32.gmra.mrb[0].mxu0 %v419
        %v487 = vpop.f32.mrb[0].mxu0
        %v488 = vadd.f32 %v415, %v487
        %v489 = vpop.f32.mrb[0].mxu0
        %490 = vdwg.mxu0
        %vm491 = vcmask 31744
        %492 = vst.msk [vmem:[%s285] sm:$0xff] %vm491, %v488
      $region64: #{tpu_custom_call.1} parent=47 // pred_fallthru
        _
      %p493 = scmp.lt.s32.totalorder %s23, 0
      %s494 = scalar_select %p493, %s23, 0
      %s495 = smul.addr %s494, 8
      %s496 = scalar_lea.vmem %s7, %s495
      // Predicated region
      $region65: #{tpu_custom_call.1} parent=47 // pred_check
        %p497 = pneg %p200
      $region66: #{tpu_custom_call.1} parent=47 // pred_check_branch
        %499 = sbr.rel (%p497) target = $region68
      $region67: #{tpu_custom_call.1} parent=47 // pred_region
        _
      $region68: #{tpu_custom_call.1} parent=47 // pred_fallthru
        _
      // Predicated region
      $region69: #{tpu_custom_call.1} parent=47 // pred_check
        %p500 = pneg %p200
      $region70: #{tpu_custom_call.1} parent=47 // pred_check_branch
        %502 = sbr.rel (%p500) target = $region72
      $region71: #{tpu_custom_call.1} parent=47 // pred_region
        %p503 = scmp.lt.s32.totalorder %s23, 0
        %s504 = scalar_select %p503, %s23, 0
        %s505 = smul.addr %s504, 8
        %s506 = scalar_lea.vmem %s7, %s505
      $region72: #{tpu_custom_call.1} parent=47 // pred_fallthru
        _
    $region48: #{tpu_custom_call.1} parent=5 // pred_fallthru
      _
    %p507 = scmp.le.s32.totalorder 2, %s13
    // Predicated region
    $region73: #{tpu_custom_call.1} parent=5 // pred_check
      %p508 = pneg %p507
    $region74: #{tpu_custom_call.1} parent=5 // pred_check_branch
      %510 = sbr.rel (%p508) target = $region76
    $region75: #{tpu_custom_call.1} parent=5 // pred_region
      %s511 = ssub.s32 %s13, 2
    $region76: #{tpu_custom_call.1} parent=5 // pred_fallthru
      _
  $region6: #{tpu_custom_call.1} parent=0 // loop_footer
    %s17 = sadd.s32 1, %s13
  $region7: #{tpu_custom_call.1} parent=0 // loop_footer_branch
    %12 = sbr.rel target = $region3
  $region8: #{tpu_custom_call.1} parent=0 // loop_exit
    _

</llo_original>
